<compile_context>
chip_gen: v6e
topology: v6e:2x2x1
jax: 0.10.0
libtpu: 0.0.40
codegen_flags: <defaults>
</compile_context>

<pallas_src>
import functools

import jax
import jax.numpy as jnp
from jax.experimental import pallas as pl
from jax.experimental.pallas import tpu as pltpu

SL1_BETA = 1.0 / 9.0
_NUM_CORES = 2          # leading "parallel" grid axis (2 TCs on v7x; no-op cost on v5e/v6e)


# ----------------------------------------------------------------------------------
# Pallas kernel: fused masked smooth-L1 sum + masked sigmoid-focal-BCE sum + pos count
# ----------------------------------------------------------------------------------
def _focal_loss_kernel(slab_ref, reg_out, cls_out, npos_out,
                       reg_acc, cls_acc, npos_acc, *,
                       n_anchors, n_loc, n_cls, tile, tiles_per_core,
                       alpha, gamma, sl1_beta):
    step = pl.program_id(1)

    @pl.when(step == 0)
    def _init():
        reg_acc[...] = jnp.zeros_like(reg_acc)
        cls_acc[...] = jnp.zeros_like(cls_acc)
        npos_acc[...] = jnp.zeros_like(npos_acc)

    # Logical tile index for this (core, step).  The input index_map clamps the DMA to the
    # last real block, so lanes >= n_anchors (ragged tail or duplicated clamped block) are
    # masked out here and contribute zero.
    tile_idx = pl.program_id(0) * tiles_per_core + step
    lane = jax.lax.broadcasted_iota(jnp.int32, (1, tile), 1)
    lane_valid = (tile_idx * tile + lane) < n_anchors                   # (1, tile) bool

    # slab rows: [pred_loc(4) | gt_loc(4) | preds(C) | labels(C) | labels_bin(1)]
    pred_loc = slab_ref[pl.ds(0, n_loc), :]                             # (4, tile)
    gt_loc = slab_ref[pl.ds(n_loc, n_loc), :]                           # (4, tile)
    preds = slab_ref[pl.ds(2 * n_loc, n_cls), :]                        # (C, tile)
    labels = slab_ref[pl.ds(2 * n_loc + n_cls, n_cls), :]               # (C, tile)
    lbin = slab_ref[pl.ds(2 * n_loc + 2 * n_cls, 1), :]                 # (1, tile)

    pos = jnp.where(lane_valid & (lbin > 0.0), 1.0, 0.0)                # positive anchors
    valid = jnp.where(lane_valid & (lbin > -1.0), 1.0, 0.0)             # non-ignored anchors

    # ---- smooth-L1 regression term, restricted to positive anchors ----
    diff = jnp.where(lane_valid, jnp.abs(pred_loc - gt_loc), 0.0)       # sanitize OOB lanes
    sl1 = jnp.where(diff < sl1_beta, diff * diff * (0.5 / sl1_beta), diff - 0.5 * sl1_beta)
    reg_acc[...] += sl1 * pos

    # ---- sigmoid focal loss term, restricted to non-ignored anchors ----
    p = jnp.where(lane_valid, preds, 0.5)                               # sanitize OOB lanes
    y = jnp.where(lane_valid, labels, 0.0)
    log_p = jnp.maximum(jnp.log(p), -100.0)       # PyTorch BCE clamps log at -100
    log_1mp = jnp.maximum(jnp.log(1.0 - p), -100.0)
    bce = -(y * log_p + (1.0 - y) * log_1mp)
    alpha_factor = alpha * y + (1.0 - alpha) * (1.0 - y)
    one_m_pt = 1.0 - (p * y + (1.0 - p) * (1.0 - y))
    if gamma == 2.0:                               # explicit square: keep pow off the EUP
        focal_pow = one_m_pt * one_m_pt
    else:
        focal_pow = one_m_pt ** gamma
    cls_acc[...] += bce * alpha_factor * focal_pow * valid

    # ---- positive-anchor count (for normalisation) ----
    npos_acc[...] += pos

    @pl.when(step == pl.num_programs(1) - 1)
    def _finalize():
        reg_out[...] = jnp.sum(reg_acc[...]).reshape(1, 1, 1)
        cls_out[...] = jnp.sum(cls_acc[...]).reshape(1, 1, 1)
        npos_out[...] = jnp.sum(npos_acc[...]).reshape(1, 1, 1)


def _run_loss_kernel(pred_loc, gt_loc, preds, labels, labels_bin, *,
                     alpha=0.25, gamma=2.0, tile=4096):
    """pred_loc/gt_loc: (N,4); preds/labels: (N,C); labels_bin: (N,1). Returns 3 scalars."""
    n, n_cls = preds.shape
    n_loc = pred_loc.shape[1]
    rows = 2 * n_loc + 2 * n_cls + 1

    # Channel-major fused slab: anchors on lanes, channels on sublanes; one DMA per step.
    # (The ccn-class slice and f32 casts are folded into this single preprocessing fusion.)
    slab = jnp.concatenate(
        [pred_loc.astype(jnp.float32).T,
         gt_loc.astype(jnp.float32).T,
         preds.astype(jnp.float32).T,
         labels.astype(jnp.float32).T,
         labels_bin.astype(jnp.float32).T], axis=0)                     # (rows, N)

    tile = max(128, min(int(tile), pl.cdiv(n, 128) * 128))              # lane tile, %128 == 0
    n_tiles = pl.cdiv(n, tile)
    tiles_per_core = pl.cdiv(n_tiles, _NUM_CORES)
    last_block = n_tiles - 1

    def slab_index_map(c, i):
        # Clamp so the DMA never starts past the last real block; lanes beyond n are
        # masked inside the kernel, so duplicated / ragged lanes contribute zero.
        return (0, jnp.minimum(c * tiles_per_core + i, last_block))

    kernel = functools.partial(
        _focal_loss_kernel, n_anchors=n, n_loc=n_loc, n_cls=n_cls, tile=tile,
        tiles_per_core=tiles_per_core, alpha=float(alpha), gamma=float(gamma),
        sl1_beta=SL1_BETA)

    reg, cls, npos = pl.pallas_call(
        kernel,
        out_shape=[jax.ShapeDtypeStruct((_NUM_CORES, 1, 1), jnp.float32)] * 3,
        grid_spec=pltpu.PrefetchScalarGridSpec(
            num_scalar_prefetch=0,
            grid=(_NUM_CORES, tiles_per_core),
            in_specs=[pl.BlockSpec((rows, tile), slab_index_map)],
            out_specs=[pl.BlockSpec((1, 1, 1), lambda c, i: (c, 0, 0))] * 3,
            scratch_shapes=[
                pltpu.VMEM((n_loc, tile), jnp.float32),   # per-lane reg partials
                pltpu.VMEM((n_cls, tile), jnp.float32),   # per-lane cls partials
                pltpu.VMEM((1, tile), jnp.float32),       # per-lane pos count
            ],
        ),
        compiler_params=pltpu.CompilerParams(
            dimension_semantics=("parallel", "arbitrary")),
    )(slab)
    # Sum the per-core partials (2 scalars each) in the wrapper.
    return jnp.sum(reg), jnp.sum(cls), jnp.sum(npos)


# ----------------------------------------------------------------------------------
# no_grad anchor-matching glue (plain JAX).  box_utils is not available; a standard
# IoU matcher is used.
# ----------------------------------------------------------------------------------
def _iou_matrix(anchors, boxes):
    # anchors (A,4), boxes (G,4); corner format [x1,y1,x2,y2]
    ax1, ay1, ax2, ay2 = (anchors[:, k:k + 1] for k in range(4))
    bx1, by1, bx2, by2 = (boxes[:, k] for k in range(4))
    iw = jnp.clip(jnp.minimum(ax2, bx2) - jnp.maximum(ax1, bx1), 0.0)
    ih = jnp.clip(jnp.minimum(ay2, by2) - jnp.maximum(ay1, by1), 0.0)
    inter = iw * ih
    a_area = (ax2 - ax1) * (ay2 - ay1)
    b_area = (bx2 - bx1) * (by2 - by1)
    return inter / (a_area + b_area - inter + 1e-8)     # (A, G)


def _match_one(gt_boxes_bs, gt_labels_bs, count, anchors, pos_th, neg_th):
    # TODO(synk): box_utils.match_anchors_wIgnore's exact box encoding is unavailable;
    #             regression targets are the matched gt corner boxes (unencoded).
    g = gt_boxes_bs.shape[0]
    valid_gt = jnp.arange(g) < count
    iou = jnp.where(valid_gt[None, :], _iou_matrix(anchors, gt_boxes_bs), -1.0)   # (A,G)
    best_iou = iou.max(-1)
    best_idx = iou.argmax(-1)
    conf = jnp.where(best_iou >= pos_th, best_idx + 1,
                     jnp.where(best_iou < neg_th, 0, -1))
    conf = jnp.where(count > 0, conf, -jnp.ones_like(conf))          # empty frame -> ignored
    loc = jnp.where(count > 0, gt_boxes_bs[best_idx], jnp.zeros_like(anchors))
    labels_bs = jnp.concatenate(
        [jnp.zeros((1, gt_labels_bs.shape[-1]), gt_labels_bs.dtype), gt_labels_bs], axis=0)
    batch_labels = labels_bs[jnp.maximum(conf, 0)]                   # (A, L)
    return conf.astype(jnp.float32), loc, batch_labels


# ----------------------------------------------------------------------------------
# Module equivalent
# ----------------------------------------------------------------------------------
class FocalLossPallas:
    """Combines sigmoid focal classification loss with smooth-L1 regression loss.

    confidence: (B, S, A, num_classes) sigmoid-activated predictions
    predicted_locations: (B, S, A, 4)
    gt_boxes: (B, S, G, 4); gt_labels: (B, S, G, num_classes); counts: (B, S)
    anchors: (A, 4)
    """

    def __init__(self, positive_threshold=0.5, negative_threshold=0.4,
                 num_classes=8, ccn_num_classes=6, alpha=0.25, gamma=2.0):
        self.positive_threshold = positive_threshold
        self.negative_threshold = negative_threshold
        self.num_classes = num_classes
        self.ccn_num_classes = ccn_num_classes
        self.alpha = float(alpha)
        self.gamma = float(gamma)

    def __call__(self, confidence, predicted_locations, gt_boxes, gt_labels, counts,
                 anchors, clayer=None):
        # TODO(synk): `clayer` callback path (cross-class refinement) has no Pallas
        #             equivalent here; only the clayer=None path is implemented.
        b, s, a, _ = confidence.shape

        # ---- no_grad anchor matching (glue, plain JAX) ----
        match = functools.partial(_match_one, anchors=anchors,
                                  pos_th=self.positive_threshold,
                                  neg_th=self.negative_threshold)
        match_bs = jax.vmap(jax.vmap(match, in_axes=(0, 0, 0)), in_axes=(0, 0, 0))
        labels_bin, gt_locations, all_labels = match_bs(gt_boxes, gt_labels, counts)
        labels_bin = jax.lax.stop_gradient(labels_bin)
        gt_locations = jax.lax.stop_gradient(gt_locations)
        all_labels = jax.lax.stop_gradient(all_labels)

        # ---- hand everything to the kernel wrapper; the [:, :ccn] slice, transpose and
        #      concat are folded into a single slab-building fusion there ----
        n = b * s * a
        pred_loc = predicted_locations.reshape(n, 4)
        gt_loc = gt_locations.reshape(n, 4)
        preds = confidence.reshape(n, self.num_classes)[:, :self.ccn_num_classes]
        labels = all_labels.reshape(n, self.num_classes)[:, :self.ccn_num_classes]
        lbin = labels_bin.reshape(n, 1)

        # TODO(synk): forward-only; add a custom_vjp / backward kernel if gradients through
        #             the loss are required for training.
        reg_sum, cls_sum, npos = _run_loss_kernel(
            pred_loc, gt_loc, preds, labels, lbin, alpha=self.alpha, gamma=self.gamma)

        num_pos = jnp.maximum(1.0, npos)
        regression_loss = reg_sum / (num_pos * 4.0)
        cls_loss = cls_sum / num_pos
        return regression_loss, cls_loss / 8.0


# ----------------------------------------------------------------------------------
# Pure-JAX reference of the masked losses (for a correctness check)
# ----------------------------------------------------------------------------------
def _reference_losses(pred_loc, gt_loc, preds, labels, labels_bin, alpha=0.25, gamma=2.0):
    pos = (labels_bin > 0.0).astype(jnp.float32)
    valid = (labels_bin > -1.0).astype(jnp.float32)
    num_pos = jnp.maximum(1.0, pos.sum())
    diff = jnp.abs(pred_loc - gt_loc)
    sl1 = jnp.where(diff < SL1_BETA, 0.5 * diff * diff / SL1_BETA, diff - 0.5 * SL1_BETA)
    reg = (sl1 * pos).sum() / (num_pos * 4.0)
    bce = -(labels * jnp.maximum(jnp.log(preds), -100.0)
            + (1.0 - labels) * jnp.maximum(jnp.log(1.0 - preds), -100.0))
    af = alpha * labels + (1.0 - alpha) * (1.0 - labels)
    pt = preds * labels + (1.0 - preds) * (1.0 - labels)
    cls = (bce * af * (1.0 - pt) ** gamma * valid).sum() / num_pos
    return reg, cls / 8.0


def _make_boxes(key, lead_shape):
    k1, k2 = jax.random.split(key)
    centers = jax.random.uniform(k1, lead_shape + (2,), minval=0.2, maxval=0.8)
    wh = jax.random.uniform(k2, lead_shape + (2,), minval=0.05, maxval=0.3)
    return jnp.concatenate([centers - wh / 2.0, centers + wh / 2.0], axis=-1)


if __name__ == "__main__":
    key = jax.random.PRNGKey(0)
    B, S, A, G = 2, 2, 64, 4
    NUM_CLASSES, CCN_NUM_CLASSES = 8, 6
    k = jax.random.split(key, 6)

    confidence = jax.nn.sigmoid(jax.random.normal(k[0], (B, S, A, NUM_CLASSES), jnp.float32))
    predicted_locations = 0.1 * jax.random.normal(k[1], (B, S, A, 4), jnp.float32)
    anchors = _make_boxes(k[2], (A,))
    gt_boxes = _make_boxes(k[3], (B, S, G))
    gt_labels = (jax.random.uniform(k[4], (B, S, G, NUM_CLASSES)) > 0.5).astype(jnp.float32)
    counts = jax.random.randint(k[5], (B, S), 0, G + 1)

    loss_fn = FocalLossPallas(positive_threshold=0.35, negative_threshold=0.3,
                              num_classes=NUM_CLASSES, ccn_num_classes=CCN_NUM_CLASSES,
                              alpha=0.25, gamma=2.0)
    reg_loss, cls_loss = loss_fn(confidence, predicted_locations, gt_boxes, gt_labels,
                                 counts, anchors)
    jax.block_until_ready((reg_loss, cls_loss))

    # sanity check against a pure-JAX reference of the same masked-loss math
    match_bs = jax.vmap(jax.vmap(functools.partial(
        _match_one, anchors=anchors, pos_th=0.35, neg_th=0.3),
        in_axes=(0, 0, 0)), in_axes=(0, 0, 0))
    lbin, gloc, alab = match_bs(gt_boxes, gt_labels, counts)
    n = B * S * A
    ref_reg, ref_cls = _reference_losses(
        predicted_locations.reshape(n, 4), gloc.reshape(n, 4),
        confidence.reshape(n, NUM_CLASSES)[:, :CCN_NUM_CLASSES],
        alab.reshape(n, NUM_CLASSES)[:, :CCN_NUM_CLASSES],
        lbin.reshape(n, 1), alpha=0.25, gamma=2.0)
    assert jnp.allclose(reg_loss, ref_reg, rtol=1e-4, atol=1e-5), (reg_loss, ref_reg)
    assert jnp.allclose(cls_loss, ref_cls, rtol=1e-4, atol=1e-5), (cls_loss, ref_cls)

    print("KERNEL_OK")
</pallas_src>

<mosaic_0001>
module attributes {stable_mosaic.version = 11 : i64} {
  func.func @_focal_loss_kernel(%arg0: i32, %arg1: i32, %arg2: memref<21x256xf32, #tpu.memory_space<vmem>>, %arg3: memref<1x1x1xf32, #tpu.memory_space<vmem>>, %arg4: memref<1x1x1xf32, #tpu.memory_space<vmem>>, %arg5: memref<1x1x1xf32, #tpu.memory_space<vmem>>, %arg6: memref<4x256xf32, #tpu.memory_space<vmem>>, %arg7: memref<6x256xf32, #tpu.memory_space<vmem>>, %arg8: memref<1x256xf32, #tpu.memory_space<vmem>>) attributes {dimension_semantics = [#tpu.dimension_semantics<parallel>, #tpu.dimension_semantics<arbitrary>], iteration_bounds = array<i64: 2, 1>, scalar_prefetch = 0 : i64, scratch_operands = 3 : i64, tpu.core_type = #tpu.core_type<tc>, window_params = [{transform_indices = @transform_0, window_bounds = array<i64: 21, 256>}, {transform_indices = @transform_1, window_bounds = array<i64: 1, 1, 1>}, {transform_indices = @transform_2, window_bounds = array<i64: 1, 1, 1>}, {transform_indices = @transform_3, window_bounds = array<i64: 1, 1, 1>}]} {
    %c0_i32 = arith.constant 0 : i32
    %0 = arith.cmpi eq, %arg1, %c0_i32 : i32
    %1 = arith.extui %0 : i1 to i32
    %c0_i32_0 = arith.constant 0 : i32
    %2 = arith.cmpi ne, %1, %c0_i32_0 : i32
    scf.if %2 {
      %cst_43 = arith.constant 0.000000e+00 : f32
      %100 = vector.broadcast %cst_43 : f32 to vector<4x256xf32>
      %c0_44 = arith.constant 0 : index
      %c0_45 = arith.constant 0 : index
      %101 = vector.load %arg6[%c0_44, %c0_45] : memref<4x256xf32, #tpu.memory_space<vmem>>, vector<4x256xf32>
      tpu.vector_store %arg6[%c0_44, %c0_45], %100 {strides = array<i32>} : memref<4x256xf32, #tpu.memory_space<vmem>>, vector<4x256xf32>,
      %cst_46 = arith.constant 0.000000e+00 : f32
      %102 = vector.broadcast %cst_46 : f32 to vector<6x256xf32>
      %c0_47 = arith.constant 0 : index
      %c0_48 = arith.constant 0 : index
      %103 = vector.load %arg7[%c0_47, %c0_48] : memref<6x256xf32, #tpu.memory_space<vmem>>, vector<6x256xf32>
      tpu.vector_store %arg7[%c0_47, %c0_48], %102 {strides = array<i32>} : memref<6x256xf32, #tpu.memory_space<vmem>>, vector<6x256xf32>,
      %cst_49 = arith.constant 0.000000e+00 : f32
      %104 = vector.broadcast %cst_49 : f32 to vector<1x256xf32>
      %c0_50 = arith.constant 0 : index
      %c0_51 = arith.constant 0 : index
      %105 = vector.load %arg8[%c0_50, %c0_51] : memref<1x256xf32, #tpu.memory_space<vmem>>, vector<1x256xf32>
      tpu.vector_store %arg8[%c0_50, %c0_51], %104 {strides = array<i32>} : memref<1x256xf32, #tpu.memory_space<vmem>>, vector<1x256xf32>,
    } else {
    }
    %c1_i32 = arith.constant 1 : i32
    %3 = arith.muli %arg0, %c1_i32 : i32
    %4 = arith.addi %3, %arg1 : i32
    %5 = tpu.iota {dimensions = array<i32: 1>} : vector<1x256xi32>
    %c256_i32 = arith.constant 256 : i32
    %6 = arith.muli %4, %c256_i32 : i32
    %7 = vector.broadcast %6 : i32 to vector<1x256xi32>
    %8 = arith.addi %7, %5 : vector<1x256xi32>
    %c256_i32_1 = arith.constant 256 : i32
    %9 = vector.broadcast %c256_i32_1 : i32 to vector<1x256xi32>
    %10 = arith.cmpi slt, %8, %9 : vector<1x256xi32>
    %c0 = arith.constant 0 : index
    %c0_2 = arith.constant 0 : index
    %11 = vector.load %arg2[%c0, %c0_2] : memref<21x256xf32, #tpu.memory_space<vmem>>, vector<4x256xf32>
    %c4 = arith.constant 4 : index
    %c0_3 = arith.constant 0 : index
    %12 = vector.load %arg2[%c4, %c0_3] : memref<21x256xf32, #tpu.memory_space<vmem>>, vector<4x256xf32>
    %c8 = arith.constant 8 : index
    %c0_4 = arith.constant 0 : index
    %13 = vector.load %arg2[%c8, %c0_4] : memref<21x256xf32, #tpu.memory_space<vmem>>, vector<6x256xf32>
    %c14 = arith.constant 14 : index
    %c0_5 = arith.constant 0 : index
    %14 = vector.load %arg2[%c14, %c0_5] : memref<21x256xf32, #tpu.memory_space<vmem>>, vector<6x256xf32>
    %c20 = arith.constant 20 : index
    %c0_6 = arith.constant 0 : index
    %15 = vector.load %arg2[%c20, %c0_6] : memref<21x256xf32, #tpu.memory_space<vmem>>, vector<1x256xf32>
    %cst = arith.constant 0.000000e+00 : f32
    %16 = vector.broadcast %cst : f32 to vector<1x256xf32>
    %17 = arith.cmpf ogt, %15, %16 : vector<1x256xf32>
    %18 = arith.andi %10, %17 : vector<1x256xi1>
    %cst_7 = arith.constant 1.000000e+00 : f32
    %cst_8 = arith.constant 0.000000e+00 : f32
    %19 = vector.broadcast %cst_7 : f32 to vector<1x256xf32>
    %20 = vector.broadcast %cst_8 : f32 to vector<1x256xf32>
    %21 = arith.select %18, %19, %20 : vector<1x256xi1>, vector<1x256xf32>
    %cst_9 = arith.constant -1.000000e+00 : f32
    %22 = vector.broadcast %cst_9 : f32 to vector<1x256xf32>
    %23 = arith.cmpf ogt, %15, %22 : vector<1x256xf32>
    %24 = arith.andi %10, %23 : vector<1x256xi1>
    %cst_10 = arith.constant 1.000000e+00 : f32
    %cst_11 = arith.constant 0.000000e+00 : f32
    %25 = vector.broadcast %cst_10 : f32 to vector<1x256xf32>
    %26 = vector.broadcast %cst_11 : f32 to vector<1x256xf32>
    %27 = arith.select %24, %25, %26 : vector<1x256xi1>, vector<1x256xf32>
    %28 = arith.subf %11, %12 : vector<4x256xf32>
    %29 = math.absf %28 : vector<4x256xf32>
    %cst_12 = arith.constant 0.000000e+00 : f32
    %30 = vector.shape_cast %10 : vector<1x256xi1> to vector<1x256xi1>
    %31 = vector.broadcast %30 : vector<1x256xi1> to vector<4x256xi1>
    %32 = vector.broadcast %cst_12 : f32 to vector<4x256xf32>
    %33 = arith.select %31, %29, %32 : vector<4x256xi1>, vector<4x256xf32>
    %cst_13 = arith.constant 0.111111112 : f32
    %34 = vector.broadcast %cst_13 : f32 to vector<4x256xf32>
    %35 = arith.cmpf olt, %33, %34 : vector<4x256xf32>
    %36 = arith.mulf %33, %33 : vector<4x256xf32>
    %cst_14 = arith.constant 4.500000e+00 : f32
    %37 = vector.broadcast %cst_14 : f32 to vector<4x256xf32>
    %38 = arith.mulf %36, %37 : vector<4x256xf32>
    %cst_15 = arith.constant 0.055555556 : f32
    %39 = vector.broadcast %cst_15 : f32 to vector<4x256xf32>
    %40 = arith.subf %33, %39 : vector<4x256xf32>
    %41 = arith.select %35, %38, %40 : vector<4x256xi1>, vector<4x256xf32>
    %c0_16 = arith.constant 0 : index
    %c0_17 = arith.constant 0 : index
    %42 = vector.load %arg6[%c0_16, %c0_17] : memref<4x256xf32, #tpu.memory_space<vmem>>, vector<4x256xf32>
    %43 = vector.broadcast %21 : vector<1x256xf32> to vector<4x256xf32>
    %44 = arith.mulf %41, %43 : vector<4x256xf32>
    %45 = arith.addf %42, %44 : vector<4x256xf32>
    %c0_18 = arith.constant 0 : index
    %c0_19 = arith.constant 0 : index
    %46 = vector.load %arg6[%c0_18, %c0_19] : memref<4x256xf32, #tpu.memory_space<vmem>>, vector<4x256xf32>
    tpu.vector_store %arg6[%c0_18, %c0_19], %45 {strides = array<i32>} : memref<4x256xf32, #tpu.memory_space<vmem>>, vector<4x256xf32>,
    %cst_20 = arith.constant 5.000000e-01 : f32
    %47 = vector.shape_cast %10 : vector<1x256xi1> to vector<1x256xi1>
    %48 = vector.broadcast %47 : vector<1x256xi1> to vector<6x256xi1>
    %49 = vector.broadcast %cst_20 : f32 to vector<6x256xf32>
    %50 = arith.select %48, %13, %49 : vector<6x256xi1>, vector<6x256xf32>
    %cst_21 = arith.constant 0.000000e+00 : f32
    %51 = vector.shape_cast %10 : vector<1x256xi1> to vector<1x256xi1>
    %52 = vector.broadcast %51 : vector<1x256xi1> to vector<6x256xi1>
    %53 = vector.broadcast %cst_21 : f32 to vector<6x256xf32>
    %54 = arith.select %52, %14, %53 : vector<6x256xi1>, vector<6x256xf32>
    %55 = math.log %50 : vector<6x256xf32>
    %cst_22 = arith.constant -1.000000e+02 : f32
    %56 = vector.broadcast %cst_22 : f32 to vector<6x256xf32>
    %57 = arith.maximumf %55, %56 : vector<6x256xf32>
    %cst_23 = arith.constant 1.000000e+00 : f32
    %58 = vector.broadcast %cst_23 : f32 to vector<6x256xf32>
    %59 = arith.subf %58, %50 : vector<6x256xf32>
    %60 = math.log %59 : vector<6x256xf32>
    %cst_24 = arith.constant -1.000000e+02 : f32
    %61 = vector.broadcast %cst_24 : f32 to vector<6x256xf32>
    %62 = arith.maximumf %60, %61 : vector<6x256xf32>
    %63 = arith.mulf %54, %57 : vector<6x256xf32>
    %cst_25 = arith.constant 1.000000e+00 : f32
    %64 = vector.broadcast %cst_25 : f32 to vector<6x256xf32>
    %65 = arith.subf %64, %54 : vector<6x256xf32>
    %66 = arith.mulf %65, %62 : vector<6x256xf32>
    %67 = arith.addf %63, %66 : vector<6x256xf32>
    %cst_26 = arith.constant 0.000000e+00 : f32
    %68 = vector.broadcast %cst_26 : f32 to vector<6x256xf32>
    %69 = arith.subf %68, %67 : vector<6x256xf32>
    %cst_27 = arith.constant 2.500000e-01 : f32
    %70 = vector.broadcast %cst_27 : f32 to vector<6x256xf32>
    %71 = arith.mulf %70, %54 : vector<6x256xf32>
    %cst_28 = arith.constant 1.000000e+00 : f32
    %72 = vector.broadcast %cst_28 : f32 to vector<6x256xf32>
    %73 = arith.subf %72, %54 : vector<6x256xf32>
    %cst_29 = arith.constant 7.500000e-01 : f32
    %74 = vector.broadcast %cst_29 : f32 to vector<6x256xf32>
    %75 = arith.mulf %74, %73 : vector<6x256xf32>
    %76 = arith.addf %71, %75 : vector<6x256xf32>
    %77 = arith.mulf %50, %54 : vector<6x256xf32>
    %cst_30 = arith.constant 1.000000e+00 : f32
    %78 = vector.broadcast %cst_30 : f32 to vector<6x256xf32>
    %79 = arith.subf %78, %50 : vector<6x256xf32>
    %cst_31 = arith.constant 1.000000e+00 : f32
    %80 = vector.broadcast %cst_31 : f32 to vector<6x256xf32>
    %81 = arith.subf %80, %54 : vector<6x256xf32>
    %82 = arith.mulf %79, %81 : vector<6x256xf32>
    %83 = arith.addf %77, %82 : vector<6x256xf32>
    %cst_32 = arith.constant 1.000000e+00 : f32
    %84 = vector.broadcast %cst_32 : f32 to vector<6x256xf32>
    %85 = arith.subf %84, %83 : vector<6x256xf32>
    %86 = arith.mulf %85, %85 : vector<6x256xf32>
    %c0_33 = arith.constant 0 : index
    %c0_34 = arith.constant 0 : index
    %87 = vector.load %arg7[%c0_33, %c0_34] : memref<6x256xf32, #tpu.memory_space<vmem>>, vector<6x256xf32>
    %88 = arith.mulf %69, %76 : vector<6x256xf32>
    %89 = arith.mulf %88, %86 : vector<6x256xf32>
    %90 = vector.broadcast %27 : vector<1x256xf32> to vector<6x256xf32>
    %91 = arith.mulf %89, %90 : vector<6x256xf32>
    %92 = arith.addf %87, %91 : vector<6x256xf32>
    %c0_35 = arith.constant 0 : index
    %c0_36 = arith.constant 0 : index
    %93 = vector.load %arg7[%c0_35, %c0_36] : memref<6x256xf32, #tpu.memory_space<vmem>>, vector<6x256xf32>
    tpu.vector_store %arg7[%c0_35, %c0_36], %92 {strides = array<i32>} : memref<6x256xf32, #tpu.memory_space<vmem>>, vector<6x256xf32>,
    %c0_37 = arith.constant 0 : index
    %c0_38 = arith.constant 0 : index
    %94 = vector.load %arg8[%c0_37, %c0_38] : memref<1x256xf32, #tpu.memory_space<vmem>>, vector<1x256xf32>
    %95 = arith.addf %94, %21 : vector<1x256xf32>
    %c0_39 = arith.constant 0 : index
    %c0_40 = arith.constant 0 : index
    %96 = vector.load %arg8[%c0_39, %c0_40] : memref<1x256xf32, #tpu.memory_space<vmem>>, vector<1x256xf32>
    tpu.vector_store %arg8[%c0_39, %c0_40], %95 {strides = array<i32>} : memref<1x256xf32, #tpu.memory_space<vmem>>, vector<1x256xf32>,
    %c0_i32_41 = arith.constant 0 : i32
    %97 = arith.cmpi eq, %arg1, %c0_i32_41 : i32
    %98 = arith.extui %97 : i1 to i32
    %c0_i32_42 = arith.constant 0 : i32
    %99 = arith.cmpi ne, %98, %c0_i32_42 : i32
    scf.if %99 {
      %c0_43 = arith.constant 0 : index
      %c0_44 = arith.constant 0 : index
      %100 = vector.load %arg6[%c0_43, %c0_44] : memref<4x256xf32, #tpu.memory_space<vmem>>, vector<4x256xf32>
      %101 = vector.shape_cast %100 : vector<4x256xf32> to vector<1x4x256xf32>
      %cst_45 = arith.constant dense<0.000000e+00> : vector<1xf32>
      %102 = vector.multi_reduction <add>, %101, %cst_45 [1, 2] : vector<1x4x256xf32> to vector<1xf32>
      %103 = vector.shape_cast %102 : vector<1xf32> to vector<1x1x1xf32>
      %104 = vector.extract %103[0, 0, 0] : f32 from vector<1x1x1xf32>
      %105 = vector.broadcast %104 : f32 to vector<1x1x1xf32>
      %c0_46 = arith.constant 0 : index
      %c0_47 = arith.constant 0 : index
      %c0_48 = arith.constant 0 : index
      %106 = vector.load %arg3[%c0_46, %c0_47, %c0_48] : memref<1x1x1xf32, #tpu.memory_space<vmem>>, vector<1x1x1xf32>
      tpu.vector_store %arg3[%c0_46, %c0_47, %c0_48], %105 {strides = array<i32>} : memref<1x1x1xf32, #tpu.memory_space<vmem>>, vector<1x1x1xf32>,
      %c0_49 = arith.constant 0 : index
      %c0_50 = arith.constant 0 : index
      %107 = vector.load %arg7[%c0_49, %c0_50] : memref<6x256xf32, #tpu.memory_space<vmem>>, vector<6x256xf32>
      %108 = vector.shape_cast %107 : vector<6x256xf32> to vector<1x6x256xf32>
      %cst_51 = arith.constant dense<0.000000e+00> : vector<1xf32>
      %109 = vector.multi_reduction <add>, %108, %cst_51 [1, 2] : vector<1x6x256xf32> to vector<1xf32>
      %110 = vector.shape_cast %109 : vector<1xf32> to vector<1x1x1xf32>
      %111 = vector.extract %110[0, 0, 0] : f32 from vector<1x1x1xf32>
      %112 = vector.broadcast %111 : f32 to vector<1x1x1xf32>
      %c0_52 = arith.constant 0 : index
      %c0_53 = arith.constant 0 : index
      %c0_54 = arith.constant 0 : index
      %113 = vector.load %arg4[%c0_52, %c0_53, %c0_54] : memref<1x1x1xf32, #tpu.memory_space<vmem>>, vector<1x1x1xf32>
      tpu.vector_store %arg4[%c0_52, %c0_53, %c0_54], %112 {strides = array<i32>} : memref<1x1x1xf32, #tpu.memory_space<vmem>>, vector<1x1x1xf32>,
      %c0_55 = arith.constant 0 : index
      %c0_56 = arith.constant 0 : index
      %114 = vector.load %arg8[%c0_55, %c0_56] : memref<1x256xf32, #tpu.memory_space<vmem>>, vector<1x256xf32>
      %115 = vector.shape_cast %114 : vector<1x256xf32> to vector<1x1x256xf32>
      %cst_57 = arith.constant dense<0.000000e+00> : vector<1xf32>
      %116 = vector.multi_reduction <add>, %115, %cst_57 [1, 2] : vector<1x1x256xf32> to vector<1xf32>
      %117 = vector.shape_cast %116 : vector<1xf32> to vector<1x1x1xf32>
      %118 = vector.extract %117[0, 0, 0] : f32 from vector<1x1x1xf32>
      %119 = vector.broadcast %118 : f32 to vector<1x1x1xf32>
      %c0_58 = arith.constant 0 : index
      %c0_59 = arith.constant 0 : index
      %c0_60 = arith.constant 0 : index
      %120 = vector.load %arg5[%c0_58, %c0_59, %c0_60] : memref<1x1x1xf32, #tpu.memory_space<vmem>>, vector<1x1x1xf32>
      tpu.vector_store %arg5[%c0_58, %c0_59, %c0_60], %119 {strides = array<i32>} : memref<1x1x1xf32, #tpu.memory_space<vmem>>, vector<1x1x1xf32>,
    } else {
    }
    return
  }
  func.func @transform_0(%arg0: i32, %arg1: i32) -> (i32, i32) {
    %c1_i32 = arith.constant 1 : i32
    %0 = arith.muli %arg0, %c1_i32 : i32
    %1 = arith.addi %0, %arg1 : i32
    %c0_i32 = arith.constant 0 : i32
    %2 = arith.minsi %1, %c0_i32 : i32
    %c0_i32_0 = arith.constant 0 : i32
    %c0_i32_1 = arith.constant 0 : i32
    return %c0_i32_0, %2 : i32, i32
  }
  func.func @transform_1(%arg0: i32, %arg1: i32) -> (i32, i32, i32) {
    %c0_i32 = arith.constant 0 : i32
    %c0_i32_0 = arith.constant 0 : i32
    %c0_i32_1 = arith.constant 0 : i32
    return %arg0, %c0_i32, %c0_i32_0 : i32, i32, i32
  }
  func.func @transform_2(%arg0: i32, %arg1: i32) -> (i32, i32, i32) {
    %c0_i32 = arith.constant 0 : i32
    %c0_i32_0 = arith.constant 0 : i32
    %c0_i32_1 = arith.constant 0 : i32
    return %arg0, %c0_i32, %c0_i32_0 : i32, i32, i32
  }
  func.func @transform_3(%arg0: i32, %arg1: i32) -> (i32, i32, i32) {
    %c0_i32 = arith.constant 0 : i32
    %c0_i32_0 = arith.constant 0 : i32
    %c0_i32_1 = arith.constant 0 : i32
    return %arg0, %c0_i32, %c0_i32_0 : i32, i32, i32
  }
}

</mosaic_0001>

<llo_original>
// kernel: tpu_custom_call.1
$region0: #{tpu_custom_call.1}
  #allocation0 [shape = 'u32[]', space=smem, size = 0x4, offset = 0x4, fixed_abs, tag = 'smem constant byte address 0x4 - core index']
  #allocation1 [shape = 'u32[144,128]{1,0:T(1,128)}', space=vmem, size = 0x12000, scoped, tag = 'internal scratch']
  #allocation2 [shape = 'f32[4,256]{1,0:T(4,128)}', space=vmem, size = 0x1000, scoped, tag = 'scratch operand']
  #allocation3 [shape = 'f32[6,256]{1,0:T(8,128)}', space=vmem, size = 0x2000, scoped, tag = 'scratch operand']
  #allocation4 [shape = 'f32[1,256]{1,0:T(1,128)}', space=vmem, size = 0x400, scoped, tag = 'scratch operand']
  %s0 = inlined_call_operand.hbm [shape: f32[21,256], index: 0, kind: input, shape index: {}]
  %s1 = inlined_call_operand.vmem [shape: f32[2,1,1], index: 1, kind: output, shape index: {0}]
  %s2 = inlined_call_operand.vmem [shape: f32[2,1,1], index: 2, kind: output, shape index: {1}]
  %s3 = inlined_call_operand.vmem [shape: f32[2,1,1], index: 3, kind: output, shape index: {2}]
  %4 = xla_tuple %s1, %s2, %s3
  %s5 = sld [smem:[#allocation0]]
  $region65: #{tpu_custom_call.1} parent=0
    _
  %s7 = ssub.s32 1, %s5
  %s8 = scalar_select 0, %s7, %s5
  $region1: #{tpu_custom_call.1} parent=0
    #allocation5 [shape = 'u8[49152]{0}', space=vmem, size = 0xc000, scoped, tag = 'input window, operand 0']
    #allocation6 [shape = 's32[2]{0}', space=sflag, size = 0x8, scoped, tag = 'scoped memory for tpu_custom_call.1']
    %9 = vsyncpa [#allocation6], 0
    %s10 = scalar_lea.sflag [#allocation6], 1
    %11 = vsyncpa %s10, 0
    loop: start=0, step=1, limit=4
    $region2: #{tpu_custom_call.1} parent=1 // loop_pre_header
      _
    $region3: #{tpu_custom_call.1} parent=1 // loop_header
      %s13 = sphi 0, %s17
      %p14 = scmp.ge.s32.totalorder %s13, 4
      %s20 = sphi 0, %s32
      %s21 = sphi 0, %s28
      %s22 = sphi 0, %s20
      %s23 = sphi 0, %s21
      %s24 = sphi 0, %s22
      %s25 = sphi 0, %s23
      %s41 = sphi 0, %s43
      %s44 = sphi 0, %s41
      %s45 = sphi 0, %s44
      %s61 = sphi 0, %s45
      %s67 = sphi 0, %s69
      %s70 = sphi 0, %s67
      %s71 = sphi 0, %s70
      %s87 = sphi 0, %s71
      %s93 = sphi 0, %s95
      %s96 = sphi 0, %s93
      %s97 = sphi 0, %s96
      %s113 = sphi 0, %s97
      %s119 = sphi 0, %s121
      %s122 = sphi 0, %s119
      %s123 = sphi 0, %s122
      %s139 = sphi 0, %s123
    $region4: #{tpu_custom_call.1} parent=1 // loop_header_branch
      %16 = sbr.rel (%p14) target = $region8
    $region5: #{tpu_custom_call.1} parent=1 // loop_body
      %s18 = ssub.s32 %s13, 1
      %s19 = ssub.s32 %s13, 2
      %s26 = sadd.s32 1, %s21
      %p27 = scmp.ge.s32.totalorder %s26, 1
      %s28 = scalar_select %p27, 0, %s26
      %s29 = sadd.s32 1, %s20
      %s30 = scalar_select %p27, %s29, %s20
      %p31 = scmp.ge.s32.totalorder %s30, 2
      %s32 = scalar_select %p31, 0, %s30
      %s33 = sadd.s32 %s20, %s21
      %p34 = scmp.lt.s32.totalorder %s33, 0
      %s35 = scalar_select %p34, %s33, 0
      %s36 = sadd.s32 %s32, %s28
      %p37 = scmp.lt.s32.totalorder %s36, 0
      %s38 = scalar_select %p37, %s36, 0
      %s39 = ssub.s32 %s35, %s38
      %p40 = scmp.eq.s32.totalorder %s39, 0
      %s42 = sadd.s32 %s41, 1
      %s43 = scalar_select %p40, %s41, %s42
      %p46 = pneg %p40
      %p47 = scmp.eq.s32.totalorder %s13, 1
      %p48 = por %p46, %p47
      %p49 = scmp.ne.s32.totalorder %s41, %s44
      %p50 = scmp.eq.s32.totalorder %s13, 0
      %p51 = por %p49, %p50
      %p52 = scmp.ne.s32.totalorder %s41, %s44
      %p53 = scmp.eq.s32.totalorder %s18, 1
      %p54 = por %p52, %p53
      %p55 = scmp.ne.s32.totalorder %s44, %s45
      %p56 = scmp.eq.s32.totalorder %s18, 0
      %p57 = por %p55, %p56
      %p58 = scmp.ne.s32.totalorder %s44, %s45
      %p59 = scmp.eq.s32.totalorder %s19, 1
      %p60 = por %p58, %p59
      %p62 = scmp.ne.s32.totalorder %s45, %s61
      %p63 = scmp.eq.s32.totalorder %s19, 0
      %p64 = por %p62, %p63
      %s65 = ssub.s32 %s20, %s32
      %p66 = scmp.eq.s32.totalorder %s65, 0
      %s68 = sadd.s32 %s67, 1
      %s69 = scalar_select %p66, %s67, %s68
      %p72 = pneg %p66
      %p73 = scmp.eq.s32.totalorder %s13, 1
      %p74 = por %p72, %p73
      %p75 = scmp.ne.s32.totalorder %s67, %s70
      %p76 = scmp.eq.s32.totalorder %s13, 0
      %p77 = por %p75, %p76
      %p78 = scmp.ne.s32.totalorder %s67, %s70
      %p79 = scmp.eq.s32.totalorder %s18, 1
      %p80 = por %p78, %p79
      %p81 = scmp.ne.s32.totalorder %s70, %s71
      %p82 = scmp.eq.s32.totalorder %s18, 0
      %p83 = por %p81, %p82
      %p84 = scmp.ne.s32.totalorder %s70, %s71
      %p85 = scmp.eq.s32.totalorder %s19, 1
      %p86 = por %p84, %p85
      %p88 = scmp.ne.s32.totalorder %s71, %s87
      %p89 = scmp.eq.s32.totalorder %s19, 0
      %p90 = por %p88, %p89
      %s91 = ssub.s32 %s20, %s32
      %p92 = scmp.eq.s32.totalorder %s91, 0
      %s94 = sadd.s32 %s93, 1
      %s95 = scalar_select %p92, %s93, %s94
      %p98 = pneg %p92
      %p99 = scmp.eq.s32.totalorder %s13, 1
      %p100 = por %p98, %p99
      %p101 = scmp.ne.s32.totalorder %s93, %s96
      %p102 = scmp.eq.s32.totalorder %s13, 0
      %p103 = por %p101, %p102
      %p104 = scmp.ne.s32.totalorder %s93, %s96
      %p105 = scmp.eq.s32.totalorder %s18, 1
      %p106 = por %p104, %p105
      %p107 = scmp.ne.s32.totalorder %s96, %s97
      %p108 = scmp.eq.s32.totalorder %s18, 0
      %p109 = por %p107, %p108
      %p110 = scmp.ne.s32.totalorder %s96, %s97
      %p111 = scmp.eq.s32.totalorder %s19, 1
      %p112 = por %p110, %p111
      %p114 = scmp.ne.s32.totalorder %s97, %s113
      %p115 = scmp.eq.s32.totalorder %s19, 0
      %p116 = por %p114, %p115
      %s117 = ssub.s32 %s20, %s32
      %p118 = scmp.eq.s32.totalorder %s117, 0
      %s120 = sadd.s32 %s119, 1
      %s121 = scalar_select %p118, %s119, %s120
      %p124 = pneg %p118
      %p125 = scmp.eq.s32.totalorder %s13, 1
      %p126 = por %p124, %p125
      %p127 = scmp.ne.s32.totalorder %s119, %s122
      %p128 = scmp.eq.s32.totalorder %s13, 0
      %p129 = por %p127, %p128
      %p130 = scmp.ne.s32.totalorder %s119, %s122
      %p131 = scmp.eq.s32.totalorder %s18, 1
      %p132 = por %p130, %p131
      %p133 = scmp.ne.s32.totalorder %s122, %s123
      %p134 = scmp.eq.s32.totalorder %s18, 0
      %p135 = por %p133, %p134
      %p136 = scmp.ne.s32.totalorder %s122, %s123
      %p137 = scmp.eq.s32.totalorder %s19, 1
      %p138 = por %p136, %p137
      %p140 = scmp.ne.s32.totalorder %s123, %s139
      %p141 = scmp.eq.s32.totalorder %s19, 0
      %p142 = por %p140, %p141
      %p143 = scmp.le.s32.totalorder 1, %s13
      %p144 = scmp.lt.s32.totalorder %s13, 3
      %p145 = pnand %p143, %p144
      %p146 = pneg %p145
      // Predicated region
      $region9: #{tpu_custom_call.1} parent=5 // pred_check
        _
      $region10: #{tpu_custom_call.1} parent=5 // pred_check_branch
        %148 = sbr.rel (%p145) target = $region12
      $region11: #{tpu_custom_call.1} parent=5 // pred_region
        %s149 = ssub.s32 %s13, 1
      $region12: #{tpu_custom_call.1} parent=5 // pred_fallthru
        _
      %p150 = scmp.lt.s32.totalorder %s13, 2
      // Predicated region
      $region13: #{tpu_custom_call.1} parent=5 // pred_check
        %p151 = pneg %p150
      $region14: #{tpu_custom_call.1} parent=5 // pred_check_branch
        %153 = sbr.rel (%p151) target = $region16
      $region15: #{tpu_custom_call.1} parent=5 // pred_region
        // Predicated region
        $region17: #{tpu_custom_call.1} parent=15 // pred_check
          %p154 = pneg %p51
        $region18: #{tpu_custom_call.1} parent=15 // pred_check_branch
          %156 = sbr.rel (%p154) target = $region20
        $region19: #{tpu_custom_call.1} parent=15 // pred_region
          %s157 = sand.u32 %s41, 1
          %s158 = scalar_lea.sflag [#allocation6], %s157
          %s159 = sand.u32 %s41, 1
          %s160 = smul.addr %s159, 48
          %s161 = scalar_lea.vmem [#allocation5], %s160
          %s162 = sadd.s32 %s20, %s21
          %p163 = scmp.lt.s32.totalorder %s162, 0
          %s164 = scalar_select %p163, %s162, 0
          %s165 = smul.u32 2, %s164
          %s167 = ssub.s32 768, 768
          %168 = vsyncadd %s158, %s167
          %s169 = smul.addr %s165, 128
          %s170 = scalar_lea.hbm %s0, %s169
          %s171 = sshll.u32 %s161, 4
          %s172 = int_to_ptr.vmem [resolvable:$true] %s171
          %177 = dma.hbm_to_vmem [thread:$0]  %s170, 768, %s172, %s158, 256, 256, 16
        $region20: #{tpu_custom_call.1} parent=15 // pred_fallthru
          _
      $region16: #{tpu_custom_call.1} parent=5 // pred_fallthru
        _
      %p178 = scmp.le.s32.totalorder 1, %s13
      %p179 = scmp.lt.s32.totalorder %s13, 3
      %p180 = pnand %p178, %p179
      %p181 = pneg %p180
      // Predicated region
      $region21: #{tpu_custom_call.1} parent=5 // pred_check
        _
      $region22: #{tpu_custom_call.1} parent=5 // pred_check_branch
        %183 = sbr.rel (%p180) target = $region24
      $region23: #{tpu_custom_call.1} parent=5 // pred_region
        %s184 = ssub.s32 %s13, 1
        %s185 = sand.u32 %s44, 1
        %s186 = scalar_lea.sflag [#allocation6], %s185
        %s187 = sand.u32 %s44, 1
        %s188 = smul.addr %s187, 48
        %s189 = scalar_lea.vmem [#allocation5], %s188
        // Predicated region
        $region25: #{tpu_custom_call.1} parent=23 // pred_check
          %p190 = pneg %p57
        $region26: #{tpu_custom_call.1} parent=23 // pred_check_branch
          %192 = sbr.rel (%p190) target = $region28
        $region27: #{tpu_custom_call.1} parent=23 // pred_region
          %193 = dma.done %s186, 768
        $region28: #{tpu_custom_call.1} parent=23 // pred_fallthru
          _
        %s194 = sand.u32 %s44, 1
        %s195 = scalar_lea.sflag [#allocation6], %s194
        %s196 = sand.u32 %s44, 1
        %s197 = smul.addr %s196, 48
        %s198 = scalar_lea.vmem [#allocation5], %s197
        %p199 = pneg %p57
        %p200 = pneg %p54
        %p201 = pneg %p83
        %p202 = pneg %p80
        %p203 = scmp.lt.s32.totalorder %s22, 1
        %s204 = scalar_select %p203, %s22, 1
        %s205 = scalar_lea.vmem %s1, %s204
        %p206 = pneg %p109
        %p207 = pneg %p106
        %p208 = scmp.lt.s32.totalorder %s22, 1
        %s209 = scalar_select %p208, %s22, 1
        %s210 = scalar_lea.vmem %s2, %s209
        %p211 = pneg %p135
        %p212 = pneg %p132
        %p213 = scmp.lt.s32.totalorder %s22, 1
        %s214 = scalar_select %p213, %s22, 1
        %s215 = scalar_lea.vmem %s3, %s214
        %s216 = sadd.s32 %s22, %s23
        %p217 = scmp.lt.s32.totalorder %s216, 0
        %s218 = scalar_select %p217, %s216, 0
        %s219 = smul.u32 2, %s218
        %p220 = scmp.lt.s32.totalorder %s22, 1
        %s221 = scalar_select %p220, %s22, 1
        %s222 = scalar_lea.vmem %s1, %s221
        %p223 = scmp.lt.s32.totalorder %s22, 1
        %s224 = scalar_select %p223, %s22, 1
        %s225 = scalar_lea.vmem %s2, %s224
        %p226 = scmp.lt.s32.totalorder %s22, 1
        %s227 = scalar_select %p226, %s22, 1
        %s228 = scalar_lea.vmem %s3, %s227
        %p229 = scmp.eq.s32.totalorder %s23, 0
        // Predicated region
        $region29: #{tpu_custom_call.1} parent=23 // pred_check
          %p230 = pneg %p229
        $region30: #{tpu_custom_call.1} parent=23 // pred_check_branch
          %232 = sbr.rel (%p230) target = $region32
        $region31: #{tpu_custom_call.1} parent=23 // pred_region
          %233 = vst [vmem:[#allocation2] sm:$0xff] 0.0
          %234 = vst [vmem:[#allocation3] sm:$0x3f] 0.0
          %235 = vst [vmem:[#allocation3 + $0x8] sm:$0x3f] 0.0
          %v236 = vlaneseq
          %vm237 = vcmp.ge.s32.totalorder %v236, 0
          %vm238 = vcmp.lt.s32.totalorder %v236, 256
          %vm239 = vmand %vm237, %vm238
          %240 = vst.msk [vmem:[#allocation4] sm:$0x3] %vm239, 0.0
        $region32: #{tpu_custom_call.1} parent=23 // pred_fallthru
          _
        %s241 = sadd.s32 %s22, %s23
        %v242 = vlaneseq
        %v243 = vand.u32 %v242, 127
        %v244 = vadd.s32 %v243, 128
        %s245 = smul.u32 %s241, 256
        %v246 = vstv %s245
        %v247 = vadd.s32 %v246, %v243
        %v248 = vadd.s32 %v246, %v244
        %vm249 = vcmp.lt.s32.totalorder %v247, 256
        %vm250 = vcmp.lt.s32.totalorder %v248, 256
        %v251 = vld [vmem:[%s189] sm:$0xf]
        %v252 = vld [vmem:[%s189 + $0x8] sm:$0xf]
        %v253 = vld [vmem:[%s189] sm:$0xf0]
        %v254 = vld [vmem:[%s189 + $0x8] sm:$0xf0]
        %v255 = vld [vmem:[%s189 + $0x10] sm:$0x3f]
        %v256 = vld [vmem:[%s189 + $0x18] sm:$0x3f]
        %v257 = vld [vmem:[%s189 + $0x10] sm:$0xc0]
        %v258 = vld [vmem:[%s189 + $0x18] sm:$0xc0]
        %v259 = vld [vmem:[%s189 + $0x20] sm:$0xf]
        %v260 = vld [vmem:[%s189 + $0x28] sm:$0xf]
        %s261 = scalar_lea.vmem %s189, 36 [#allocation5]
        %v262 = vld [vmem:[%s261] ss:$8 sm:$0x3]
        %vm263 = vcmp.gt.f32.partialorder %v262, 0.0
        %v264 = vsel %vm263, 1, 0
        %v265 = vlaneseq
        %v266 = vshrl.u32 %v265, 7
        %v267 = vsub.s32 0, %v266
        %v268 = vrot.slane %v264, %v267
        %v269 = vlaneseq
        %v270 = vshrl.u32 %v269, 7
        %v271 = vsub.s32 1, %v270
        %v272 = vrot.slane %v264, %v271
        %vm273 = vcmp.ne.s32.totalorder %v268, 0
        %vm274 = vcmp.ne.s32.totalorder %v272, 0
        %vm275 = vmand %vm249, %vm273
        %vm276 = vmand %vm250, %vm274
        %v277 = vsel %vm275, 1.0, 0.0
        %v278 = vsel %vm276, 1.0, 0.0
        %vm279 = vcmp.gt.f32.partialorder %v262, -1.0
        %v280 = vsel %vm279, 1, 0
        %v281 = vlaneseq
        %v282 = vshrl.u32 %v281, 7
        %v283 = vsub.s32 0, %v282
        %v284 = vrot.slane %v280, %v283
        %v285 = vlaneseq
        %v286 = vshrl.u32 %v285, 7
        %v287 = vsub.s32 1, %v286
        %v288 = vrot.slane %v280, %v287
        %vm289 = vcmp.ne.s32.totalorder %v284, 0
        %vm290 = vcmp.ne.s32.totalorder %v288, 0
        %vm291 = vmand %vm249, %vm289
        %vm292 = vmand %vm250, %vm290
        %v293 = vsel %vm291, 1.0, 0.0
        %v294 = vsel %vm292, 1.0, 0.0
        %v297 = vrot.slane %v253, 4
        %v298 = vrot.slane %v254, 4
        %v301 = vsub.f32 %v251, %v297
        %v302 = vsub.f32 %v252, %v298
        %v303 = vand.u32 2147483647, %v301
        %v304 = vand.u32 2147483647, %v302
        %v305 = vsel %vm249, 1, 0
        %v306 = vsel %vm250, 1, 0
        %vm307 = vcmp.eq.s32.totalorder %v305, 1
        %vm308 = vcmp.eq.s32.totalorder %v306, 1
        %v309 = vsel %vm307, %v303, 0.0
        %v310 = vsel %vm308, %v304, 0.0
        %vm311 = vcmp.lt.f32.partialorder %v309, 0.11111111
        %vm312 = vcmp.lt.f32.partialorder %v310, 0.11111111
        %v313 = vmul.f32 %v309, %v309
        %v314 = vmul.f32 %v310, %v310
        %v315 = vmul.f32 %v313, 4.5
        %v316 = vmul.f32 %v314, 4.5
        %v317 = vsub.f32 %v309, 0.055555556
        %v318 = vsub.f32 %v310, 0.055555556
        %v319 = vsel %vm311, %v315, %v317
        %v320 = vsel %vm312, %v316, %v318
        %v321 = vld [vmem:[#allocation2] sm:$0xff]
        %v322 = vlaneseq
        %v323 = vshrl.u32 %v322, 7
        %v324 = vsub.s32 0, %v323
        %v325 = vrot.slane %v277, %v324
        %v326 = vlaneseq
        %v327 = vshrl.u32 %v326, 7
        %v328 = vsub.s32 0, %v327
        %v329 = vrot.slane %v278, %v328
        %v330 = vmul.f32 %v319, %v325
        %v331 = vmul.f32 %v320, %v329
        %v334 = vcombine.low %v330, %v331
        %v336 = vadd.f32 %v321, %v334
        %337 = vst [vmem:[#allocation2] sm:$0xff] %v336
        %v338 = vsel %vm307, %v255, 0.5
        %v339 = vsel %vm308, %v256, 0.5
        %v340 = vsel %vm307, %v257, 0.0
        %v341 = vsel %vm308, %v258, 0.0
        %v342 = vsel %vm307, %v259, 0.0
        %v343 = vsel %vm308, %v260, 0.0
        %v344 = vlog2.pop %v338
        %v345 = vmul.f32 %v344, 0.6931472
        %v346 = vlog2.pop %v339
        %v347 = vmul.f32 %v346, 0.6931472
        %v348 = vmax.f32 %v345, -100.0
        %v349 = vmax.f32 %v347, -100.0
        %v350 = vsub.f32 1.0, %v338
        %v351 = vsub.f32 1.0, %v339
        %v352 = vlog2.pop %v350
        %v353 = vmul.f32 %v352, 0.6931472
        %v354 = vlog2.pop %v351
        %v355 = vmul.f32 %v354, 0.6931472
        %v356 = vmax.f32 %v353, -100.0
        %v357 = vmax.f32 %v355, -100.0
        %v360 = vrot.slane %v348, 2
        %v361 = vrot.slane %v349, 2
        %v364 = vmul.f32 %v340, %v360
        %v365 = vmul.f32 %v341, %v361
        %v366 = vmul.f32 %v342, %v360
        %v367 = vmul.f32 %v343, %v361
        %v368 = vsub.f32 1.0, %v340
        %v369 = vsub.f32 1.0, %v341
        %v370 = vsub.f32 1.0, %v342
        %v371 = vsub.f32 1.0, %v343
        %v374 = vrot.slane %v356, 2
        %v375 = vrot.slane %v357, 2
        %v378 = vmul.f32 %v368, %v374
        %v379 = vmul.f32 %v369, %v375
        %v380 = vmul.f32 %v370, %v374
        %v381 = vmul.f32 %v371, %v375
        %v382 = vadd.f32 %v364, %v378
        %v383 = vadd.f32 %v365, %v379
        %v384 = vadd.f32 %v366, %v380
        %v385 = vadd.f32 %v367, %v381
        %v386 = vsub.f32 0.0, %v382
        %v387 = vsub.f32 0.0, %v383
        %v388 = vsub.f32 0.0, %v384
        %v389 = vsub.f32 0.0, %v385
        %v390 = vmul.f32 %v340, 0.25
        %v391 = vmul.f32 %v341, 0.25
        %v392 = vmul.f32 %v342, 0.25
        %v393 = vmul.f32 %v343, 0.25
        %v394 = vmul.f32 %v368, 0.75
        %v395 = vmul.f32 %v369, 0.75
        %v396 = vmul.f32 %v370, 0.75
        %v397 = vmul.f32 %v371, 0.75
        %v398 = vadd.f32 %v390, %v394
        %v399 = vadd.f32 %v391, %v395
        %v400 = vadd.f32 %v392, %v396
        %v401 = vadd.f32 %v393, %v397
        %vm406 = vcmask 1041408
        %v407 = vrot.slane %v340, 6
        %v408 = vrot.slane %v342, 6
        %v409 = vsel %vm406, %v407, %v408
        %v410 = vrot.slane %v341, 6
        %v411 = vrot.slane %v343, 6
        %v412 = vsel %vm406, %v410, %v411
        %v415 = vmul.f32 %v338, %v409
        %v416 = vmul.f32 %v339, %v412
        %v421 = vrot.slane %v368, 6
        %v422 = vrot.slane %v370, 6
        %v423 = vsel %vm406, %v421, %v422
        %v424 = vrot.slane %v369, 6
        %v425 = vrot.slane %v371, 6
        %v426 = vsel %vm406, %v424, %v425
        %v429 = vmul.f32 %v350, %v423
        %v430 = vmul.f32 %v351, %v426
        %v431 = vadd.f32 %v415, %v429
        %v432 = vadd.f32 %v416, %v430
        %v433 = vsub.f32 1.0, %v431
        %v434 = vsub.f32 1.0, %v432
        %v435 = vmul.f32 %v433, %v433
        %v436 = vmul.f32 %v434, %v434
        %v437 = vld [vmem:[#allocation3] sm:$0x3f]
        %v438 = vld [vmem:[#allocation3 + $0x8] sm:$0x3f]
        %v439 = vmul.f32 %v386, %v398
        %v440 = vmul.f32 %v387, %v399
        %v441 = vmul.f32 %v388, %v400
        %v442 = vmul.f32 %v389, %v401
        %v445 = vrot.slane %v435, 2
        %v446 = vrot.slane %v436, 2
        %v449 = vmul.f32 %v439, %v445
        %v450 = vmul.f32 %v440, %v446
        %v451 = vmul.f32 %v441, %v445
        %v452 = vmul.f32 %v442, %v446
        %v453 = vlaneseq
        %v454 = vshrl.u32 %v453, 7
        %v455 = vsub.s32 0, %v454
        %v456 = vrot.slane %v293, %v455
        %v457 = vlaneseq
        %v458 = vshrl.u32 %v457, 7
        %v459 = vsub.s32 0, %v458
        %v460 = vrot.slane %v294, %v459
        %v461 = vmul.f32 %v449, %v456
        %v462 = vmul.f32 %v450, %v460
        %v463 = vmul.f32 %v451, %v456
        %v464 = vmul.f32 %v452, %v460
        %v469 = vrot.slane %v461, 6
        %v470 = vrot.slane %v463, 6
        %v471 = vsel %vm406, %v469, %v470
        %v472 = vrot.slane %v462, 6
        %v473 = vrot.slane %v464, 6
        %v474 = vsel %vm406, %v472, %v473
        %v477 = vadd.f32 %v437, %v471
        %v478 = vadd.f32 %v438, %v474
        %479 = vst [vmem:[#allocation3] sm:$0x3f] %v477
        %480 = vst [vmem:[#allocation3 + $0x8] sm:$0x3f] %v478
        %v481 = vld [vmem:[#allocation4] sm:$0x3]
        %v484 = vcombine.low %v277, %v278
        %v486 = vunpack.c.l.s4 1966171168
        %v487 = vunpack.c.0.s8 %v486
        %v488 = vlaneseq
        %v489 = vshrl.u32 %v488, 7
        %v490 = vsub.s32 %v487, %v489
        %v491 = vrot.slane %v484, %v490
        %v493 = vunpack.c.l.s4 1966171168
        %v494 = vunpack.c.0.s8 %v493
        %v495 = vlaneseq
        %v496 = vshrl.u32 %v495, 7
        %v497 = vsub.s32 %v494, %v496
        %v498 = vrot.slane %v491, %v497
        %v500 = vadd.f32 %v481, %v498
        %v501 = vlaneseq
        %vm502 = vcmp.ge.s32.totalorder %v501, 0
        %vm503 = vcmp.lt.s32.totalorder %v501, 256
        %vm504 = vmand %vm502, %vm503
        %505 = vst.msk [vmem:[#allocation4] sm:$0x3] %vm504, %v500
        // Predicated region
        $region33: #{tpu_custom_call.1} parent=23 // pred_check
          %p506 = pneg %p229
        $region34: #{tpu_custom_call.1} parent=23 // pred_check_branch
          %508 = sbr.rel (%p506) target = $region36
        $region35: #{tpu_custom_call.1} parent=23 // pred_region
          %v509 = vld [vmem:[#allocation2] sm:$0xff]
          %v511 = vcombine.high %v509, %v509
          %vm513 = vcmask 1043456
          %v514 = vsel %vm513, %v509, 0.0
          %v515 = vsel %vm513, %v511, 0.0
          %v516 = vadd.f32 %v514, %v515
          %517 = vadd.xlane.f32.xlu0 %v516
          %v518 = vpop.xlane.xlu0 %517
          %v519 = vrot.slane %v518, 4
          %v520 = vadd.f32 %v518, %v519
          %v521 = vrot.slane %v520, 2
          %v522 = vadd.f32 %v520, %v521
          %v523 = vrot.slane %v522, 1
          %v524 = vadd.f32 %v522, %v523
          %s525 = vtos %v524
          %v526 = vstv %s525
          %vm527 = vcmask 0
          %528 = vst.msk [vmem:[%s222] sm:$0x1] %vm527, %v526
          %v529 = vld [vmem:[#allocation3] sm:$0x3f]
          %v530 = vld [vmem:[#allocation3 + $0x8] sm:$0x3f]
          %vm531 = vcmask 1045504
          %v532 = vsel %vm531, %v529, 0.0
          %v533 = vsel %vm531, %v530, 0.0
          %v534 = vadd.f32 %v532, %v533
          %535 = vadd.xlane.f32.xlu0 %v534
          %v536 = vpop.xlane.xlu0 %535
          %v537 = vrot.slane %v536, 4
          %v538 = vadd.f32 %v536, %v537
          %v539 = vrot.slane %v538, 2
          %v540 = vadd.f32 %v538, %v539
          %v541 = vrot.slane %v540, 1
          %v542 = vadd.f32 %v540, %v541
          %s543 = vtos %v542
          %v544 = vstv %s543
          %545 = vst.msk [vmem:[%s225] sm:$0x1] %vm527, %v544
          %v546 = vld [vmem:[#allocation4] sm:$0x3]
          %v548 = vlaneseq
          %v549 = vshrl.u32 %v548, 7
          %v550 = vsub.s32 0, %v549
          %v551 = vrot.slane %v546, %v550
          %v552 = vlaneseq
          %v553 = vshrl.u32 %v552, 7
          %v554 = vsub.s32 1, %v553
          %v555 = vrot.slane %v546, %v554
          %vm558 = vcmask 1040384
          %v559 = vsel %vm558, %v551, 0.0
          %v560 = vsel %vm558, %v555, 0.0
          %v561 = vadd.f32 %v559, %v560
          %562 = vadd.xlane.f32.xlu0 %v561
          %v563 = vpop.xlane.xlu0 %562
          %v564 = vrot.slane %v563, 4
          %v565 = vadd.f32 %v563, %v564
          %v566 = vrot.slane %v565, 2
          %v567 = vadd.f32 %v565, %v566
          %v568 = vrot.slane %v567, 1
          %v569 = vadd.f32 %v567, %v568
          %s570 = vtos %v569
          %v571 = vstv %s570
          %572 = vst.msk [vmem:[%s228] sm:$0x1] %vm527, %v571
        $region36: #{tpu_custom_call.1} parent=23 // pred_fallthru
          _
        %p573 = scmp.lt.s32.totalorder %s22, 1
        %s574 = scalar_select %p573, %s22, 1
        %s575 = scalar_lea.vmem %s1, %s574
        %p576 = scmp.lt.s32.totalorder %s22, 1
        %s577 = scalar_select %p576, %s22, 1
        %s578 = scalar_lea.vmem %s2, %s577
        %p579 = scmp.lt.s32.totalorder %s22, 1
        %s580 = scalar_select %p579, %s22, 1
        %s581 = scalar_lea.vmem %s3, %s580
        // Predicated region
        $region37: #{tpu_custom_call.1} parent=23 // pred_check
          %p582 = pneg %p80
        $region38: #{tpu_custom_call.1} parent=23 // pred_check_branch
          %584 = sbr.rel (%p582) target = $region40
        $region39: #{tpu_custom_call.1} parent=23 // pred_region
          _
        $region40: #{tpu_custom_call.1} parent=23 // pred_fallthru
          _
        // Predicated region
        $region41: #{tpu_custom_call.1} parent=23 // pred_check
          %p585 = pneg %p106
        $region42: #{tpu_custom_call.1} parent=23 // pred_check_branch
          %587 = sbr.rel (%p585) target = $region44
        $region43: #{tpu_custom_call.1} parent=23 // pred_region
          _
        $region44: #{tpu_custom_call.1} parent=23 // pred_fallthru
          _
        // Predicated region
        $region45: #{tpu_custom_call.1} parent=23 // pred_check
          %p588 = pneg %p132
        $region46: #{tpu_custom_call.1} parent=23 // pred_check_branch
          %590 = sbr.rel (%p588) target = $region48
        $region47: #{tpu_custom_call.1} parent=23 // pred_region
          _
        $region48: #{tpu_custom_call.1} parent=23 // pred_fallthru
          _
      $region24: #{tpu_custom_call.1} parent=5 // pred_fallthru
        _
      %p591 = scmp.le.s32.totalorder 2, %s13
      // Predicated region
      $region49: #{tpu_custom_call.1} parent=5 // pred_check
        %p592 = pneg %p591
      $region50: #{tpu_custom_call.1} parent=5 // pred_check_branch
        %594 = sbr.rel (%p592) target = $region52
      $region51: #{tpu_custom_call.1} parent=5 // pred_region
        %s595 = ssub.s32 %s13, 2
        // Predicated region
        $region53: #{tpu_custom_call.1} parent=51 // pred_check
          %p596 = pneg %p86
        $region54: #{tpu_custom_call.1} parent=51 // pred_check_branch
          %598 = sbr.rel (%p596) target = $region56
        $region55: #{tpu_custom_call.1} parent=51 // pred_region
          %p599 = scmp.lt.s32.totalorder %s24, 1
          %s600 = scalar_select %p599, %s24, 1
          %s601 = scalar_lea.vmem %s1, %s600
        $region56: #{tpu_custom_call.1} parent=51 // pred_fallthru
          _
        // Predicated region
        $region57: #{tpu_custom_call.1} parent=51 // pred_check
          %p602 = pneg %p112
        $region58: #{tpu_custom_call.1} parent=51 // pred_check_branch
          %604 = sbr.rel (%p602) target = $region60
        $region59: #{tpu_custom_call.1} parent=51 // pred_region
          %p605 = scmp.lt.s32.totalorder %s24, 1
          %s606 = scalar_select %p605, %s24, 1
          %s607 = scalar_lea.vmem %s2, %s606
        $region60: #{tpu_custom_call.1} parent=51 // pred_fallthru
          _
        // Predicated region
        $region61: #{tpu_custom_call.1} parent=51 // pred_check
          %p608 = pneg %p138
        $region62: #{tpu_custom_call.1} parent=51 // pred_check_branch
          %610 = sbr.rel (%p608) target = $region64
        $region63: #{tpu_custom_call.1} parent=51 // pred_region
          %p611 = scmp.lt.s32.totalorder %s24, 1
          %s612 = scalar_select %p611, %s24, 1
          %s613 = scalar_lea.vmem %s3, %s612
        $region64: #{tpu_custom_call.1} parent=51 // pred_fallthru
          _
      $region52: #{tpu_custom_call.1} parent=5 // pred_fallthru
        _
    $region6: #{tpu_custom_call.1} parent=1 // loop_footer
      %s17 = sadd.s32 1, %s13
    $region7: #{tpu_custom_call.1} parent=1 // loop_footer_branch
      %12 = sbr.rel target = $region3
    $region8: #{tpu_custom_call.1} parent=1 // loop_exit
      _
    %614 = vsyncpa [#allocation6], 1
    %s615 = scalar_lea.sflag [#allocation6], 1
    %616 = vsyncpa %s615, 1

</llo_original>
